<compile_context>
chip_gen: v5e
topology: v5e:2x2
jax: 0.10.0
libtpu: 0.0.40
codegen_flags: <defaults>
</compile_context>

<pallas_src>
import math

import jax
import jax.numpy as jnp
from jax.experimental import pallas as pl
from jax.experimental.pallas import tpu as pltpu

# ---- module hyper-parameters (defaults of ToDecibels.__init__) --------------
POWER = 2
CONSTANT = 10.0 if POWER == 2 else 20.0     # self.constant
REF = "max"                                 # per-batch max reference
TOP_DB = 80.0                               # abs(top_db)
NORMALIZED = True
AMIN = 1e-7

_LN10 = math.log(10.0)
# Per-element slope K1 such that  out = max(K1 * ln(clamp(x, amin)) + k2, floor)
if TOP_DB is not None and NORMALIZED:
    K1 = CONSTANT / (_LN10 * TOP_DB)
else:
    K1 = CONSTANT / _LN10


# -----------------------------------------------------------------------------
# Per-batch scalar folding (ref subtraction + top_db clip + normalization).
# -----------------------------------------------------------------------------
def _per_batch_params(x):
    """Returns (k2, floor), each (B,) f32.

    Because log10 is monotone, max(spec_db) over (F,T) is analytically
        CONSTANT*log10(clamp(max(x),amin)) - 10*log10(clamp(ref,amin)),
    so the second whole-array reduction of the reference is never needed.
    """
    B = x.shape[0]
    xf = x.astype(jnp.float32)                       # cast BEFORE the max (bf16 inputs)
    max_x = jnp.max(xf, axis=tuple(range(1, x.ndim)))            # (B,), fusable reduce
    if REF == "max":
        ref_value = max_x
    else:
        ref_value = jnp.full((B,), float(REF), jnp.float32)
    log_ref = jnp.log10(jnp.maximum(ref_value, AMIN))            # (B,)

    if TOP_DB is not None:
        max_spec = CONSTANT * jnp.log10(jnp.maximum(max_x, AMIN)) - 10.0 * log_ref
        if NORMALIZED:
            k2 = 1.0 - (10.0 / TOP_DB) * log_ref
            floor = max_spec / TOP_DB
        else:
            k2 = -10.0 * log_ref
            floor = max_spec - TOP_DB
    else:
        k2 = -10.0 * log_ref
        floor = jnp.full_like(log_ref, -jnp.inf)

    return k2.astype(jnp.float32), floor.astype(jnp.float32)


# -----------------------------------------------------------------------------
# Kernel: pure elementwise  out = max(K1 * ln(max(x, amin)) + k2[b], floor[b])
# -----------------------------------------------------------------------------
def _to_decibels_kernel(k2_ref, floor_ref, x_ref, o_ref):
    # k2_ref, floor_ref: (B,) f32 in SMEM.  x_ref/o_ref: (1, r_tile, c_tile) VMEM.
    b = pl.program_id(0)
    k2 = k2_ref[b]
    floor = floor_ref[b]
    x = x_ref[...].astype(jnp.float32)
    y = jnp.maximum(K1 * jnp.log(jnp.maximum(x, AMIN)) + k2, floor)
    o_ref[...] = y.astype(o_ref.dtype)


# -----------------------------------------------------------------------------
# Generation-aware VMEM / tiling policy.
# -----------------------------------------------------------------------------
def _vmem_plan():
    """(vmem_limit_bytes, per-block budget bytes), derived per TPU generation."""
    try:
        cap = int(pltpu.get_tpu_info().vmem_capacity_bytes)
    except Exception:
        cap = 64 * 1024 * 1024          # conservative (v7x per-TC physical VMEM)
    # Never sit on the physical cap; 4 live blocks (2x in + 2x out) must leave
    # headroom for Mosaic internal scratch.
    vmem_limit = min(cap // 2, 48 * 1024 * 1024)
    block_budget = vmem_limit // 6      # 4 * block <= ~2/3 of the scoped limit
    return int(vmem_limit), int(block_budget)


def _lane_dense_view(x):
    """Lane-dense (B, R, C) view of x (free contiguous reshape), or x itself."""
    B, F, T = x.shape
    total = F * T
    if T % 128 == 0 or total % 128 != 0:
        return x, None                  # already lane-dense, or cannot help
    lane = 128
    for k in range(min(total // 128, 16), 0, -1):   # widest divisor <= 2048 lanes
        if total % (128 * k) == 0:
            lane = 128 * k
            break
    return x.reshape(B, total // lane, lane), (B, F, T)


def _choose_tiles(B, R, C, block_budget_bytes, itemsize, min_steps=8):
    """Pick (r_tile, c_tile): lane-dense, inside the per-block budget, and with
    enough grid steps to keep the pipeline (and v7x's two TCs) busy."""
    budget_elems = max(block_budget_bytes // max(itemsize, 1), 8 * 128)
    lane_dense = (C % 128 == 0)

    # Lane tile: keep full width as long as at least 8 rows still fit.
    if (not lane_dense) or R * C <= budget_elems or 8 * C <= budget_elems:
        c_tile = C
    else:
        c_tile = min(C, max(128, (budget_elems // 8) // 128 * 128))

    # Row tile given the lane tile (multiple of 8, or the full row dim).
    if R * c_tile <= budget_elems or R <= 8:
        r_tile = R
    else:
        r_tile = min(R, max(8, (budget_elems // c_tile) // 8 * 8))

    def steps(rt, ct):
        return B * pl.cdiv(R, rt) * pl.cdiv(C, ct)

    # Shrink (rows first, then lanes) until >= min_steps grid steps.
    while steps(r_tile, c_tile) < min_steps:
        if r_tile > 8:
            r_tile = max(8, (((r_tile + 1) // 2) // 8) * 8)
        elif lane_dense and c_tile > 128:
            c_tile = max(128, (((c_tile + 1) // 2) // 128) * 128)
        else:
            break
    return r_tile, c_tile


# -----------------------------------------------------------------------------
# Wrapper
# -----------------------------------------------------------------------------
def to_decibels(x):
    """x: (B, F, T) power spectrogram -> normalized dB, same shape/dtype."""
    B, F, T = x.shape
    k2, floor = _per_batch_params(x)                 # (B,), (B,) f32

    x3, orig_shape = _lane_dense_view(x)             # (B, R, C), C % 128 == 0 if possible
    _, R, C = x3.shape

    vmem_limit, block_budget = _vmem_plan()
    r_tile, c_tile = _choose_tiles(B, R, C, block_budget, x.dtype.itemsize)
    grid = (B, pl.cdiv(R, r_tile), pl.cdiv(C, c_tile))

    out = pl.pallas_call(
        _to_decibels_kernel,
        out_shape=jax.ShapeDtypeStruct((B, R, C), x.dtype),
        grid=grid,
        in_specs=[
            pl.BlockSpec(memory_space=pltpu.MemorySpace.SMEM),   # k2  (B,)
            pl.BlockSpec(memory_space=pltpu.MemorySpace.SMEM),   # floor (B,)
            pl.BlockSpec((1, r_tile, c_tile), lambda b, i, j: (b, i, j)),
        ],
        out_specs=pl.BlockSpec((1, r_tile, c_tile), lambda b, i, j: (b, i, j)),
        compiler_params=pltpu.CompilerParams(
            dimension_semantics=("parallel", "parallel", "parallel"),
            vmem_limit_bytes=vmem_limit),
    )(k2, floor, x3)

    if orig_shape is not None:
        out = out.reshape(orig_shape)
    return out


# -----------------------------------------------------------------------------
# Pure-JAX reference (mirrors the PyTorch forward exactly).
# -----------------------------------------------------------------------------
def _to_decibels_ref(x):
    B = x.shape[0]
    x = x.astype(jnp.float32)
    if REF == "max":
        ref_value = jnp.max(x.reshape(B, -1), axis=-1)[:, None, None]
    else:
        ref_value = jnp.asarray(float(REF), jnp.float32)
    spec_db = jnp.log10(jnp.maximum(x, AMIN)) * CONSTANT
    spec_db = spec_db - jnp.log10(jnp.maximum(ref_value, AMIN)) * 10.0
    if TOP_DB is not None:
        max_spec = jnp.max(spec_db.reshape(B, -1), axis=-1)[:, None, None]
        spec_db = jnp.maximum(spec_db, max_spec - TOP_DB)
        if NORMALIZED:
            spec_db = (spec_db + TOP_DB) / TOP_DB
    return spec_db


if __name__ == "__main__":
    key = jax.random.PRNGKey(0)
    shapes = [
        (2, 16, 256),   # lane-dense T; min-step splitting -> (1,8,128) tiles
        (2, 20, 96),    # T not /128 but F*T is -> flattened lane-dense view
        (2, 7, 96),     # fallback: tiny non-lane-dense plane (full-dim blocks)
    ]
    for i, shp in enumerate(shapes):
        k = jax.random.fold_in(key, i)
        # Non-negative power-spectrogram-like input.
        x = jax.random.normal(k, shp, dtype=jnp.float32) ** 2
        out = jax.block_until_ready(to_decibels(x))
        ref = _to_decibels_ref(x)
        assert out.shape == shp and out.dtype == x.dtype
        assert jnp.allclose(out, ref, rtol=1e-5, atol=1e-5), f"mismatch for {shp}"
    print("KERNEL_OK")
</pallas_src>

<mosaic_0001>
module attributes {stable_mosaic.version = 11 : i64} {
  func.func @_to_decibels_kernel(%arg0: i32, %arg1: i32, %arg2: i32, %arg3: memref<2xf32, #tpu.memory_space<smem>>, %arg4: memref<2xf32, #tpu.memory_space<smem>>, %arg5: memref<1x8x128xf32, #tpu.memory_space<vmem>>, %arg6: memref<1x8x128xf32, #tpu.memory_space<vmem>>) attributes {dimension_semantics = [#tpu.dimension_semantics<parallel>, #tpu.dimension_semantics<parallel>, #tpu.dimension_semantics<parallel>], iteration_bounds = array<i64: 2, 2, 2>, scalar_prefetch = 0 : i64, scratch_operands = 0 : i64, tpu.core_type = #tpu.core_type<tc>, window_params = [{transform_indices = @transform_0, window_bounds = array<i64: 2>}, {transform_indices = @transform_1, window_bounds = array<i64: 2>}, {transform_indices = @transform_2, window_bounds = array<i64: 1, 8, 128>}, {transform_indices = @transform_3, window_bounds = array<i64: 1, 8, 128>}]} {
    %0 = arith.index_cast %arg0 : i32 to index
    %1 = memref.load %arg3[%0] : memref<2xf32, #tpu.memory_space<smem>>
    %2 = arith.index_cast %arg0 : i32 to index
    %3 = memref.load %arg4[%2] : memref<2xf32, #tpu.memory_space<smem>>
    %c0 = arith.constant 0 : index
    %c0_0 = arith.constant 0 : index
    %c0_1 = arith.constant 0 : index
    %4 = vector.load %arg5[%c0, %c0_0, %c0_1] : memref<1x8x128xf32, #tpu.memory_space<vmem>>, vector<1x8x128xf32>
    %cst = arith.constant 1.000000e-07 : f32
    %5 = vector.broadcast %cst : f32 to vector<1x8x128xf32>
    %6 = arith.maximumf %4, %5 : vector<1x8x128xf32>
    %7 = math.log %6 : vector<1x8x128xf32>
    %cst_2 = arith.constant 0.0542868115 : f32
    %8 = vector.broadcast %cst_2 : f32 to vector<1x8x128xf32>
    %9 = arith.mulf %8, %7 : vector<1x8x128xf32>
    %10 = vector.broadcast %1 : f32 to vector<1x8x128xf32>
    %11 = arith.addf %9, %10 : vector<1x8x128xf32>
    %12 = vector.broadcast %3 : f32 to vector<1x8x128xf32>
    %13 = arith.maximumf %11, %12 : vector<1x8x128xf32>
    %c0_3 = arith.constant 0 : index
    %c0_4 = arith.constant 0 : index
    %c0_5 = arith.constant 0 : index
    %14 = vector.load %arg6[%c0_3, %c0_4, %c0_5] : memref<1x8x128xf32, #tpu.memory_space<vmem>>, vector<1x8x128xf32>
    tpu.vector_store %arg6[%c0_3, %c0_4, %c0_5], %13 {strides = array<i32>} : memref<1x8x128xf32, #tpu.memory_space<vmem>>, vector<1x8x128xf32>,
    return
  }
  func.func @transform_0(%arg0: i32, %arg1: i32, %arg2: i32) -> i32 {
    %c0_i32 = arith.constant 0 : i32
    %c0_i32_0 = arith.constant 0 : i32
    return %c0_i32 : i32
  }
  func.func @transform_1(%arg0: i32, %arg1: i32, %arg2: i32) -> i32 {
    %c0_i32 = arith.constant 0 : i32
    %c0_i32_0 = arith.constant 0 : i32
    return %c0_i32 : i32
  }
  func.func @transform_2(%arg0: i32, %arg1: i32, %arg2: i32) -> (i32, i32, i32) {
    %c0_i32 = arith.constant 0 : i32
    return %arg0, %arg1, %arg2 : i32, i32, i32
  }
  func.func @transform_3(%arg0: i32, %arg1: i32, %arg2: i32) -> (i32, i32, i32) {
    %c0_i32 = arith.constant 0 : i32
    return %arg0, %arg1, %arg2 : i32, i32, i32
  }
}

</mosaic_0001>

<llo_original>
// kernel: tpu_custom_call.1
$region0: #{tpu_custom_call.1}
  #allocation0 [shape = 'u32[]', space=smem, size = 0x4, offset = 0x4, fixed_abs, tag = 'smem constant byte address 0x4 - core index']
  #allocation1 [shape = 'u32[72,128]{1,0:T(1,128)}', space=vmem, size = 0x9000, scoped, tag = 'internal scratch']
  %s0 = inlined_call_operand.hbm [shape: f32[2], index: 0, kind: input, shape index: {}]
  %s1 = inlined_call_operand.hbm [shape: f32[2], index: 1, kind: input, shape index: {}]
  %s2 = inlined_call_operand.hbm [shape: f32[2,16,256], index: 2, kind: input, shape index: {}]
  %s3 = inlined_call_operand.hbm [shape: f32[2,16,256], index: 3, kind: output, shape index: {}]
  %s4 = sld [smem:[#allocation0]]
  $region57: #{tpu_custom_call.1} parent=0
    _
  %s6 = ssub.s32 1, %s4
  %s7 = scalar_select 0, %s6, %s4
  $region1: #{tpu_custom_call.1} parent=0
    #allocation2 [shape = 'u8[512]{0}', space=smem, size = 0x200, scoped, tag = 'input window, operand 0, single buffered']
    #allocation3 [shape = 's32[2]{0}', space=sflag, size = 0x8, scoped, tag = 'scoped memory for tpu_custom_call.1']
    #allocation4 [shape = 's32[2]{0}', space=sflag, size = 0x8, scoped, tag = 'scoped memory for tpu_custom_call.1']
    #allocation5 [shape = 's32[2]{0}', space=sflag, size = 0x8, scoped, tag = 'scoped memory for tpu_custom_call.1']
    #allocation6 [shape = 'u8[512]{0}', space=smem, size = 0x200, scoped, tag = 'input window, operand 1, single buffered']
    #allocation7 [shape = 's32[1]{0}', space=sflag, size = 0x4, scoped, tag = 'scoped memory for tpu_custom_call.1']
    #allocation8 [shape = 'u8[8192]{0}', space=vmem, size = 0x2000, scoped, tag = 'input window, operand 2']
    #allocation9 [shape = 'u8[8192]{0}', space=vmem, size = 0x2000, scoped, tag = 'output window, operand 0']
    %8 = vsyncpa [#allocation5], 0
    %9 = vsyncpa [#allocation7], 0
    %10 = vsyncpa [#allocation3], 0
    %s11 = scalar_lea.sflag [#allocation3], 1
    %12 = vsyncpa %s11, 0
    %13 = vsyncpa [#allocation4], 0
    %s14 = scalar_lea.sflag [#allocation4], 1
    %15 = vsyncpa %s14, 0
    loop: start=0, step=1, limit=10
    $region2: #{tpu_custom_call.1} parent=1 // loop_pre_header
      _
    $region3: #{tpu_custom_call.1} parent=1 // loop_header
      %s17 = sphi 0, %s21
      %p18 = scmp.ge.s32.totalorder %s17, 10
      %s24 = sphi 0, %s43
      %s25 = sphi 0, %s39
      %s26 = sphi 0, %s35
      %s27 = sphi 0, %s24
      %s28 = sphi 0, %s25
      %s29 = sphi 0, %s26
      %s30 = sphi 0, %s27
      %s31 = sphi 0, %s28
      %s32 = sphi 0, %s29
      %s44 = sphi 0, %s44
      %s46 = sphi 0, %s44
      %s47 = sphi 0, %s46
      %s61 = sphi 0, %s47
      %s65 = sphi 0, %s65
      %s67 = sphi 0, %s65
      %s68 = sphi 0, %s67
      %s82 = sphi 0, %s68
      %s92 = sphi 0, %s94
      %s95 = sphi 0, %s92
      %s96 = sphi 0, %s95
      %s112 = sphi 0, %s96
      %s122 = sphi 0, %s124
      %s125 = sphi 0, %s122
      %s126 = sphi 0, %s125
      %s142 = sphi 0, %s126
    $region4: #{tpu_custom_call.1} parent=1 // loop_header_branch
      %20 = sbr.rel (%p18) target = $region8
    $region5: #{tpu_custom_call.1} parent=1 // loop_body
      %s22 = ssub.s32 %s17, 1
      %s23 = ssub.s32 %s17, 2
      %s33 = sadd.s32 1, %s26
      %p34 = scmp.ge.s32.totalorder %s33, 2
      %s35 = scalar_select %p34, 0, %s33
      %s36 = sadd.s32 1, %s25
      %s37 = scalar_select %p34, %s36, %s25
      %p38 = scmp.ge.s32.totalorder %s37, 2
      %s39 = scalar_select %p38, 0, %s37
      %s40 = sadd.s32 1, %s24
      %s41 = scalar_select %p38, %s40, %s24
      %p42 = scmp.ge.s32.totalorder %s41, 2
      %s43 = scalar_select %p42, 0, %s41
      %s45 = sadd.s32 %s44, 1
      %p48 = scmp.eq.s32.totalorder %s17, 7
      %p49 = scmp.ne.s32.totalorder %s44, %s46
      %p50 = scmp.eq.s32.totalorder %s17, 0
      %p51 = por %p49, %p50
      %p52 = scmp.ne.s32.totalorder %s44, %s46
      %p53 = scmp.eq.s32.totalorder %s22, 7
      %p54 = por %p52, %p53
      %p55 = scmp.ne.s32.totalorder %s46, %s47
      %p56 = scmp.eq.s32.totalorder %s22, 0
      %p57 = por %p55, %p56
      %p58 = scmp.ne.s32.totalorder %s46, %s47
      %p59 = scmp.eq.s32.totalorder %s23, 7
      %p60 = por %p58, %p59
      %p62 = scmp.ne.s32.totalorder %s47, %s61
      %p63 = scmp.eq.s32.totalorder %s23, 0
      %p64 = por %p62, %p63
      %s66 = sadd.s32 %s65, 1
      %p69 = scmp.eq.s32.totalorder %s17, 7
      %p70 = scmp.ne.s32.totalorder %s65, %s67
      %p71 = scmp.eq.s32.totalorder %s17, 0
      %p72 = por %p70, %p71
      %p73 = scmp.ne.s32.totalorder %s65, %s67
      %p74 = scmp.eq.s32.totalorder %s22, 7
      %p75 = por %p73, %p74
      %p76 = scmp.ne.s32.totalorder %s67, %s68
      %p77 = scmp.eq.s32.totalorder %s22, 0
      %p78 = por %p76, %p77
      %p79 = scmp.ne.s32.totalorder %s67, %s68
      %p80 = scmp.eq.s32.totalorder %s23, 7
      %p81 = por %p79, %p80
      %p83 = scmp.ne.s32.totalorder %s68, %s82
      %p84 = scmp.eq.s32.totalorder %s23, 0
      %p85 = por %p83, %p84
      %s86 = ssub.s32 %s24, %s43
      %s87 = ssub.s32 %s25, %s39
      %s88 = sor.u32 %s86, %s87
      %s89 = ssub.s32 %s26, %s35
      %s90 = sor.u32 %s88, %s89
      %p91 = scmp.eq.s32.totalorder %s90, 0
      %s93 = sadd.s32 %s92, 1
      %s94 = scalar_select %p91, %s92, %s93
      %p97 = pneg %p91
      %p98 = scmp.eq.s32.totalorder %s17, 7
      %p99 = por %p97, %p98
      %p100 = scmp.ne.s32.totalorder %s92, %s95
      %p101 = scmp.eq.s32.totalorder %s17, 0
      %p102 = por %p100, %p101
      %p103 = scmp.ne.s32.totalorder %s92, %s95
      %p104 = scmp.eq.s32.totalorder %s22, 7
      %p105 = por %p103, %p104
      %p106 = scmp.ne.s32.totalorder %s95, %s96
      %p107 = scmp.eq.s32.totalorder %s22, 0
      %p108 = por %p106, %p107
      %p109 = scmp.ne.s32.totalorder %s95, %s96
      %p110 = scmp.eq.s32.totalorder %s23, 7
      %p111 = por %p109, %p110
      %p113 = scmp.ne.s32.totalorder %s96, %s112
      %p114 = scmp.eq.s32.totalorder %s23, 0
      %p115 = por %p113, %p114
      %s116 = ssub.s32 %s24, %s43
      %s117 = ssub.s32 %s25, %s39
      %s118 = sor.u32 %s116, %s117
      %s119 = ssub.s32 %s26, %s35
      %s120 = sor.u32 %s118, %s119
      %p121 = scmp.eq.s32.totalorder %s120, 0
      %s123 = sadd.s32 %s122, 1
      %s124 = scalar_select %p121, %s122, %s123
      %p127 = pneg %p121
      %p128 = scmp.eq.s32.totalorder %s17, 7
      %p129 = por %p127, %p128
      %p130 = scmp.ne.s32.totalorder %s122, %s125
      %p131 = scmp.eq.s32.totalorder %s17, 0
      %p132 = por %p130, %p131
      %p133 = scmp.ne.s32.totalorder %s122, %s125
      %p134 = scmp.eq.s32.totalorder %s22, 7
      %p135 = por %p133, %p134
      %p136 = scmp.ne.s32.totalorder %s125, %s126
      %p137 = scmp.eq.s32.totalorder %s22, 0
      %p138 = por %p136, %p137
      %p139 = scmp.ne.s32.totalorder %s125, %s126
      %p140 = scmp.eq.s32.totalorder %s23, 7
      %p141 = por %p139, %p140
      %p143 = scmp.ne.s32.totalorder %s126, %s142
      %p144 = scmp.eq.s32.totalorder %s23, 0
      %p145 = por %p143, %p144
      %p146 = scmp.le.s32.totalorder 1, %s17
      %p147 = scmp.lt.s32.totalorder %s17, 9
      %p148 = pnand %p146, %p147
      %p149 = pneg %p148
      // Predicated region
      $region9: #{tpu_custom_call.1} parent=5 // pred_check
        _
      $region10: #{tpu_custom_call.1} parent=5 // pred_check_branch
        %151 = sbr.rel (%p148) target = $region12
      $region11: #{tpu_custom_call.1} parent=5 // pred_region
        %s152 = ssub.s32 %s17, 1
        // Predicated region
        $region13: #{tpu_custom_call.1} parent=11 // pred_check
          %p153 = pneg %p57
        $region14: #{tpu_custom_call.1} parent=11 // pred_check_branch
          %155 = sbr.rel (%p153) target = $region16
        $region15: #{tpu_custom_call.1} parent=11 // pred_region
          %157 = vsyncadd [#allocation5], 0
          %s159 = sshll.u32 %s0, 4
          %s160 = int_to_ptr.hbm [resolvable:$true] %s159
          %162 = dma.hbm_to_smem %s160, 16, [#allocation2], [#allocation5]
        $region16: #{tpu_custom_call.1} parent=11 // pred_fallthru
          _
        // Predicated region
        $region17: #{tpu_custom_call.1} parent=11 // pred_check
          %p163 = pneg %p78
        $region18: #{tpu_custom_call.1} parent=11 // pred_check_branch
          %165 = sbr.rel (%p163) target = $region20
        $region19: #{tpu_custom_call.1} parent=11 // pred_region
          %167 = vsyncadd [#allocation7], 0
          %s169 = sshll.u32 %s1, 4
          %s170 = int_to_ptr.hbm [resolvable:$true] %s169
          %172 = dma.hbm_to_smem %s170, 16, [#allocation6], [#allocation7]
        $region20: #{tpu_custom_call.1} parent=11 // pred_fallthru
          _
      $region12: #{tpu_custom_call.1} parent=5 // pred_fallthru
        _
      %p173 = scmp.lt.s32.totalorder %s17, 8
      // Predicated region
      $region21: #{tpu_custom_call.1} parent=5 // pred_check
        %p174 = pneg %p173
      $region22: #{tpu_custom_call.1} parent=5 // pred_check_branch
        %176 = sbr.rel (%p174) target = $region24
      $region23: #{tpu_custom_call.1} parent=5 // pred_region
        // Predicated region
        $region25: #{tpu_custom_call.1} parent=23 // pred_check
          %p177 = pneg %p102
        $region26: #{tpu_custom_call.1} parent=23 // pred_check_branch
          %179 = sbr.rel (%p177) target = $region28
        $region27: #{tpu_custom_call.1} parent=23 // pred_region
          %s180 = sand.u32 %s92, 1
          %s181 = scalar_lea.sflag [#allocation3], %s180
          %s182 = sand.u32 %s92, 1
          %s183 = smul.addr %s182, 8
          %s184 = scalar_lea.vmem [#allocation8], %s183
          %186 = vsyncadd %s181, 0
          %s187 = smul.addr %s25, 2
          %s188 = sadd.s32 %s26, %s187
          %s189 = smul.addr %s24, 4
          %s190 = sadd.s32 %s188, %s189
          %s191 = smul.addr %s190, 8
          %s192 = scalar_lea.hbm %s2, %s191
          %s194 = sshll.u32 %s192, 4
          %s195 = int_to_ptr.hbm [resolvable:$true] %s194
          %s196 = sshll.u32 %s184, 4
          %s197 = int_to_ptr.vmem [resolvable:$true] %s196
          %199 = dma.hbm_to_vmem [thread:$0]  %s195, 128, %s197, %s181
        $region28: #{tpu_custom_call.1} parent=23 // pred_fallthru
          _
      $region24: #{tpu_custom_call.1} parent=5 // pred_fallthru
        _
      %p200 = scmp.le.s32.totalorder 1, %s17
      %p201 = scmp.lt.s32.totalorder %s17, 9
      %p202 = pnand %p200, %p201
      %p203 = pneg %p202
      // Predicated region
      $region29: #{tpu_custom_call.1} parent=5 // pred_check
        _
      $region30: #{tpu_custom_call.1} parent=5 // pred_check_branch
        %205 = sbr.rel (%p202) target = $region32
      $region31: #{tpu_custom_call.1} parent=5 // pred_region
        %s206 = ssub.s32 %s17, 1
        // Predicated region
        $region33: #{tpu_custom_call.1} parent=31 // pred_check
          %p207 = pneg %p57
        $region34: #{tpu_custom_call.1} parent=31 // pred_check_branch
          %209 = sbr.rel (%p207) target = $region36
        $region35: #{tpu_custom_call.1} parent=31 // pred_region
          %211 = dma.done [#allocation5], 16
        $region36: #{tpu_custom_call.1} parent=31 // pred_fallthru
          _
        // Predicated region
        $region37: #{tpu_custom_call.1} parent=31 // pred_check
          %p212 = pneg %p78
        $region38: #{tpu_custom_call.1} parent=31 // pred_check_branch
          %214 = sbr.rel (%p212) target = $region40
        $region39: #{tpu_custom_call.1} parent=31 // pred_region
          %216 = dma.done [#allocation7], 16
        $region40: #{tpu_custom_call.1} parent=31 // pred_fallthru
          _
        %s217 = sand.u32 %s95, 1
        %s218 = scalar_lea.sflag [#allocation3], %s217
        %s219 = sand.u32 %s95, 1
        %s220 = smul.addr %s219, 8
        %s221 = scalar_lea.vmem [#allocation8], %s220
        // Predicated region
        $region41: #{tpu_custom_call.1} parent=31 // pred_check
          %p222 = pneg %p108
        $region42: #{tpu_custom_call.1} parent=31 // pred_check_branch
          %224 = sbr.rel (%p222) target = $region44
        $region43: #{tpu_custom_call.1} parent=31 // pred_region
          %226 = dma.done %s218, 128
        $region44: #{tpu_custom_call.1} parent=31 // pred_fallthru
          _
        %227 = sfence
        %p228 = pneg %p57
        %p229 = pneg %p54
        %p230 = pneg %p78
        %p231 = pneg %p75
        %s232 = sand.u32 %s95, 1
        %s233 = scalar_lea.sflag [#allocation3], %s232
        %s234 = sand.u32 %s95, 1
        %s235 = smul.addr %s234, 8
        %s236 = scalar_lea.vmem [#allocation8], %s235
        %p237 = pneg %p108
        %p238 = pneg %p105
        %p239 = pneg %p138
        %p240 = pneg %p135
        %s241 = sand.u32 %s125, 1
        %s242 = scalar_lea.sflag [#allocation4], %s241
        %s243 = sand.u32 %s125, 1
        %s244 = smul.addr %s243, 8
        %s245 = scalar_lea.vmem [#allocation9], %s244
        %s246 = sld [smem:[#allocation2 + %s27]]
        %s247 = sld [smem:[#allocation6 + %s27]]
        %v248 = vld [vmem:[%s221] sm:$0xff]
        %v249 = vmax.f32 %v248, 1e-07
        %v250 = vlog2.pop %v249
        %v251 = vmul.f32 %v250, 0.6931472
        %v252 = vmul.f32 %v251, 0.05428681
        %v253 = vstv %s246
        %v254 = vadd.f32 %v252, %v253
        %v255 = vstv %s247
        %v256 = vmax.f32 %v254, %v255
        %257 = vst [vmem:[%s245] sm:$0xff] %v256
        %s258 = sand.u32 %s125, 1
        %s259 = scalar_lea.sflag [#allocation4], %s258
        %s260 = sand.u32 %s125, 1
        %s261 = smul.addr %s260, 8
        %s262 = scalar_lea.vmem [#allocation9], %s261
        // Predicated region
        $region45: #{tpu_custom_call.1} parent=31 // pred_check
          %p263 = pneg %p135
        $region46: #{tpu_custom_call.1} parent=31 // pred_check_branch
          %265 = sbr.rel (%p263) target = $region48
        $region47: #{tpu_custom_call.1} parent=31 // pred_region
          %267 = vsyncadd %s259, 0
          %s268 = smul.addr %s28, 2
          %s269 = sadd.s32 %s29, %s268
          %s270 = smul.addr %s27, 4
          %s271 = sadd.s32 %s269, %s270
          %s272 = smul.addr %s271, 8
          %s273 = scalar_lea.hbm %s3, %s272
          %s275 = sshll.u32 %s262, 4
          %s276 = int_to_ptr.vmem [resolvable:$true] %s275
          %s277 = sshll.u32 %s273, 4
          %s278 = int_to_ptr.hbm [resolvable:$true] %s277
          %280 = dma.vmem_to_hbm [thread:$0]  %s276, 128, %s278, %s259
        $region48: #{tpu_custom_call.1} parent=31 // pred_fallthru
          _
      $region32: #{tpu_custom_call.1} parent=5 // pred_fallthru
        _
      %p281 = scmp.le.s32.totalorder 2, %s17
      // Predicated region
      $region49: #{tpu_custom_call.1} parent=5 // pred_check
        %p282 = pneg %p281
      $region50: #{tpu_custom_call.1} parent=5 // pred_check_branch
        %284 = sbr.rel (%p282) target = $region52
      $region51: #{tpu_custom_call.1} parent=5 // pred_region
        %s285 = ssub.s32 %s17, 2
        // Predicated region
        $region53: #{tpu_custom_call.1} parent=51 // pred_check
          %p286 = pneg %p141
        $region54: #{tpu_custom_call.1} parent=51 // pred_check_branch
          %288 = sbr.rel (%p286) target = $region56
        $region55: #{tpu_custom_call.1} parent=51 // pred_region
          %s289 = sand.u32 %s126, 1
          %s290 = scalar_lea.sflag [#allocation4], %s289
          %s291 = sand.u32 %s126, 1
          %s292 = smul.addr %s291, 8
          %s293 = scalar_lea.vmem [#allocation9], %s292
          %295 = dma.done %s290, 128
        $region56: #{tpu_custom_call.1} parent=51 // pred_fallthru
          _
      $region52: #{tpu_custom_call.1} parent=5 // pred_fallthru
        _
    $region6: #{tpu_custom_call.1} parent=1 // loop_footer
      %s21 = sadd.s32 1, %s17
    $region7: #{tpu_custom_call.1} parent=1 // loop_footer_branch
      %16 = sbr.rel target = $region3
    $region8: #{tpu_custom_call.1} parent=1 // loop_exit
      _
    %296 = vsyncpa [#allocation3], 1
    %s297 = scalar_lea.sflag [#allocation3], 1
    %298 = vsyncpa %s297, 1
    %299 = vsyncpa [#allocation4], 1
    %s300 = scalar_lea.sflag [#allocation4], 1
    %301 = vsyncpa %s300, 1
    %302 = vsyncpa [#allocation5], 1
    %s303 = scalar_lea.sflag [#allocation5], 1
    %304 = vsyncpa %s303, 1
    %305 = vsyncpa [#allocation7], 1

</llo_original>
